<compile_context>
chip_gen: v5e
topology: v5e:2x2
jax: 0.10.0
libtpu: 0.0.40
codegen_flags: <defaults>
</compile_context>

<pallas_src>
import functools

import jax
import jax.numpy as jnp
from jax.experimental import pallas as pl
from jax.experimental.pallas import tpu as pltpu


def _round_up(x, m):
    return (x + m - 1) // m * m


def _conv_bn_mish_kernel(xm_ref, xh_ref, w_ref, b_ref, o_ref, *, k, wp, tm):
    """One (batch n, spatial tile m, OC tile) grid step.

    xm_ref: (1, C, TM)      bf16  main flat-spatial window (lane aligned)
    xh_ref: (1, C, HALO_R)  bf16  right halo (next aligned chunk of the image)
    w_ref : (OC_t, C*k*k)   bf16  BN-scale-folded weights, (kh, kw, c) minor order
    b_ref : (OC_t, 1)       f32   folded BN bias
    o_ref : (1, OC_t, TM)   bf16  lane-dense output tile (flat spatial last)
    """
    # One aligned slab per tile; taps are derived in-register (lane shifts),
    # not as k*k unaligned VMEM loads.
    xw = jnp.concatenate([xm_ref[0], xh_ref[0]], axis=-1)       # (C, TM + HALO_R)

    taps = []
    for kh in range(k):
        for kw in range(k):
            off = kh * wp + kw                                   # static tap offset
            taps.append(xw[:, off:off + tm])                     # (C, TM)
    patch = jnp.concatenate(taps, axis=0)                        # (C*k*k, TM) bf16

    # Single MXU matmul with contraction depth C*k*k (f32 accumulation).
    acc = jnp.dot(w_ref[...], patch, preferred_element_type=jnp.float32)
    y = acc + b_ref[...]                                         # fused BN bias

    # Mish with a single transcendental:
    #   tanh(softplus(y)) == (e^2 + 2e) / (e^2 + 2e + 2),  e = exp(y)
    # clamped/branched for large y (ratio -> 1, mish(y) -> y).
    e = jnp.exp(jnp.minimum(y, 20.0))
    num = e * (e + 2.0)
    t = num * pl.reciprocal(num + 2.0, approx=True)
    o_ref[0] = jnp.where(y > 20.0, y, y * t).astype(o_ref.dtype)


@functools.partial(jax.jit, static_argnames=("kernel_size", "stride", "eps"))
def conv_layer_forward(x, weight, gamma, beta, running_mean, running_var,
                       *, kernel_size, stride, eps=1e-5):
    """Forward of ConvLayer(in_c, out_c, k, s, 'mish', norm=True, bias=False).

    x:      (N, C, H, W)   float32
    weight: (OC, C, k, k)  float32  (PyTorch Conv2d layout)
    returns (N, OC, Ho, Wo) float32
    """
    N, C, H, W = x.shape
    OC = weight.shape[0]
    k = kernel_size
    s = stride
    pad = (k - 1) // 2                 # matches the module's explicit pad=(k-1)//2

    Hp, Wp = H + 2 * pad, W + 2 * pad
    Ho = (H + 2 * pad - k) // s + 1
    Wo = (W + 2 * pad - k) // s + 1
    Ho_dense = Hp - k + 1              # dense (stride-1) output rows
    M_dense = Ho_dense * Wp            # dense flat output columns (wrap cols dropped)
    CKK = C * k * k
    halo = (k - 1) * Wp + (k - 1)
    halo_min = _round_up(max(halo, 1), 128)

    # --- spatial tile width: minimize padded waste, prefer larger tiles,
    #     keep the in-kernel (C*k*k, TM) patch within a VMEM-friendly budget.
    patch_budget = 8 << 20
    TM, best_key = None, None
    for t in range(halo_min, max(2048, halo_min) + 1, 128):
        if t > halo_min and CKK * t * 2 > patch_budget:
            continue
        key = (_round_up(M_dense, t) - M_dense, -t)
        if TM is None or key < best_key:
            TM, best_key = t, key
    M_pad = _round_up(M_dense, TM)
    # Halo block: smallest 128-multiple divisor of TM that covers the tap halo.
    HALO_R = next(d for d in range(128, TM + 1, 128) if TM % d == 0 and d >= halo)
    R = TM // HALO_R

    # --- OC tiling (MXU-aligned output rows).
    if OC <= 256:
        OC_pad = _round_up(OC, 8)
        OC_t = OC_pad
    else:
        OC_t = 256
        OC_pad = _round_up(OC, OC_t)

    # --- single fused pad + bf16 cast; flat length covers the last tile's halo
    #     so no second padding pass over HBM is needed.
    Lp_needed = M_pad + HALO_R
    extra_rows = max(0, (Lp_needed - Hp * Wp + Wp - 1) // Wp)
    x_flat = jnp.pad(x.astype(jnp.bfloat16),
                     ((0, 0), (0, 0), (pad, pad + extra_rows), (pad, pad)))
    x_flat = x_flat.reshape(N, C, (Hp + extra_rows) * Wp)
    Lp = x_flat.shape[-1]

    # --- fold eval-mode BatchNorm into conv weights (scale) + per-channel bias.
    scale = gamma * jax.lax.rsqrt(running_var + eps)              # (OC,)
    bias = (beta - running_mean * scale).astype(jnp.float32)
    bias = jnp.pad(bias, (0, OC_pad - OC)).reshape(OC_pad, 1)
    w2d = (weight * scale[:, None, None, None]).transpose(0, 2, 3, 1)   # (OC,k,k,C)
    w2d = w2d.reshape(OC, CKK)
    w2d = jnp.pad(w2d, ((0, OC_pad - OC), (0, 0))).astype(jnp.bfloat16)

    grid = (N, M_pad // TM, OC_pad // OC_t)
    kernel = functools.partial(_conv_bn_mish_kernel, k=k, wp=Wp, tm=TM)

    # --- generation-aware VMEM budget (double-buffered blocks + live values).
    try:
        vmem_cap = int(pltpu.get_tpu_info().vmem_capacity_bytes)
    except Exception:
        vmem_cap = 64 << 20                      # conservative (v7x per-core VMEM)
    blk_bytes = 2 * (C * TM * 2 + C * HALO_R * 2
                     + OC_t * _round_up(CKK, 128) * 2 + OC_t * 128 * 4
                     + OC_t * TM * 2)
    val_bytes = C * (TM + HALO_R) * 2 + CKK * TM * 2 + 4 * OC_t * TM * 4
    bytes_needed = blk_bytes + val_bytes
    vmem_limit = int(min(vmem_cap - (4 << 20),
                         max(32 << 20, 2 * bytes_needed + (4 << 20))))

    cost = pl.CostEstimate(
        flops=2 * N * M_pad * OC_pad * CKK,
        transcendentals=2 * N * M_pad * OC_pad,
        bytes_accessed=(N * C * Lp * 2 + N * (M_pad // TM) * C * HALO_R * 2
                        + OC_pad * CKK * 2 + N * OC_pad * M_pad * 2),
    )

    out_flat = pl.pallas_call(
        kernel,
        out_shape=jax.ShapeDtypeStruct((N, OC_pad, M_pad), jnp.bfloat16),
        grid=grid,
        in_specs=[
            pl.BlockSpec((1, C, TM), lambda n, m, oc: (n, 0, m)),            # main
            pl.BlockSpec((1, C, HALO_R), lambda n, m, oc: (n, 0, (m + 1) * R)),  # halo
            pl.BlockSpec((OC_t, CKK), lambda n, m, oc: (oc, 0)),             # weights
            pl.BlockSpec((OC_t, 1), lambda n, m, oc: (oc, 0)),               # bias
        ],
        out_specs=pl.BlockSpec((1, OC_t, TM), lambda n, m, oc: (n, oc, m)),
        compiler_params=pltpu.CompilerParams(
            dimension_semantics=("parallel", "parallel", "parallel"),
            vmem_limit_bytes=vmem_limit,
        ),
        cost_estimate=cost,
    )(x_flat, x_flat, w2d, bias)

    # (N, OC_pad, M_pad) -> drop OC/spatial padding and wrap columns -> NCHW.
    out = out_flat[:, :OC, :M_dense].reshape(N, OC, Ho_dense, Wp)
    # TODO(synk): stride > 1 still computes the dense stride-1 result and then
    # subsamples (s^2 extra work); a row-block strided-im2col tiling would remove it.
    out = out[:, :, :(Ho - 1) * s + 1:s, :(Wo - 1) * s + 1:s]
    return out.astype(jnp.float32)


def _reference(x, weight, gamma, beta, running_mean, running_var,
               kernel_size, stride, eps=1e-5):
    pad = (kernel_size - 1) // 2
    y = jax.lax.conv_general_dilated(
        x, weight, window_strides=(stride, stride),
        padding=[(pad, pad), (pad, pad)],
        dimension_numbers=("NCHW", "OIHW", "NCHW"))
    scale = (gamma / jnp.sqrt(running_var + eps)).reshape(1, -1, 1, 1)
    bias = (beta - running_mean * gamma / jnp.sqrt(running_var + eps)).reshape(1, -1, 1, 1)
    y = y * scale + bias
    return y * jnp.tanh(jax.nn.softplus(y))


if __name__ == "__main__":
    # ConvLayer(in=4, out=8, k=3, s=1, activation='mish', norm=True, bias=False)
    N, C, H, W = 2, 4, 16, 16
    OC, K, S = 8, 3, 1

    key = jax.random.PRNGKey(0)
    kx, kw, kg, kb, km, kv = jax.random.split(key, 6)
    x = jax.random.normal(kx, (N, C, H, W), dtype=jnp.float32)
    weight = jax.random.normal(kw, (OC, C, K, K), dtype=jnp.float32) * 0.1
    gamma = 1.0 + 0.1 * jax.random.normal(kg, (OC,), dtype=jnp.float32)
    beta = 0.1 * jax.random.normal(kb, (OC,), dtype=jnp.float32)
    running_mean = 0.1 * jax.random.normal(km, (OC,), dtype=jnp.float32)
    running_var = jnp.abs(1.0 + 0.1 * jax.random.normal(kv, (OC,), dtype=jnp.float32))

    out = conv_layer_forward(x, weight, gamma, beta, running_mean, running_var,
                             kernel_size=K, stride=S)
    out = jax.block_until_ready(out)
    assert out.shape == (N, OC, H, W), out.shape

    ref = _reference(x, weight, gamma, beta, running_mean, running_var, K, S)
    assert jnp.allclose(out, ref, atol=5e-2, rtol=5e-2), "mismatch vs reference"

    print("KERNEL_OK")
</pallas_src>

<mosaic_0001>
module attributes {stable_mosaic.version = 11 : i64} {
  func.func @_conv_bn_mish_kernel(%arg0: i32, %arg1: i32, %arg2: i32, %arg3: memref<1x4x384xbf16, #tpu.memory_space<vmem>>, %arg4: memref<1x4x128xbf16, #tpu.memory_space<vmem>>, %arg5: memref<8x36xbf16, #tpu.memory_space<vmem>>, %arg6: memref<8x1xf32, #tpu.memory_space<vmem>>, %arg7: memref<1x8x384xbf16, #tpu.memory_space<vmem>>) attributes {dimension_semantics = [#tpu.dimension_semantics<parallel>, #tpu.dimension_semantics<parallel>, #tpu.dimension_semantics<parallel>], iteration_bounds = array<i64: 2, 1, 1>, scalar_prefetch = 0 : i64, scratch_operands = 0 : i64, tpu.core_type = #tpu.core_type<tc>, window_params = [{transform_indices = @transform_0, window_bounds = array<i64: 1, 4, 384>}, {transform_indices = @transform_1, window_bounds = array<i64: 1, 4, 128>}, {transform_indices = @transform_2, window_bounds = array<i64: 8, 36>}, {transform_indices = @transform_3, window_bounds = array<i64: 8, 1>}, {transform_indices = @transform_4, window_bounds = array<i64: 1, 8, 384>}]} {
    %c0 = arith.constant 0 : index
    %c0_0 = arith.constant 0 : index
    %c0_1 = arith.constant 0 : index
    %0 = vector.load %arg3[%c0, %c0_0, %c0_1] : memref<1x4x384xbf16, #tpu.memory_space<vmem>>, vector<1x4x384xbf16>
    %1 = vector.shape_cast %0 : vector<1x4x384xbf16> to vector<4x384xbf16>
    %c0_2 = arith.constant 0 : index
    %c0_3 = arith.constant 0 : index
    %c0_4 = arith.constant 0 : index
    %2 = vector.load %arg4[%c0_2, %c0_3, %c0_4] : memref<1x4x128xbf16, #tpu.memory_space<vmem>>, vector<1x4x128xbf16>
    %3 = vector.shape_cast %2 : vector<1x4x128xbf16> to vector<4x128xbf16>
    %4 = tpu.concatenate %1, %3 in 1 : vector<4x384xbf16>, vector<4x128xbf16> -> vector<4x512xbf16>
    %5 = vector.extract_strided_slice %4 {offsets = [0, 0], sizes = [4, 384], strides = [1, 1]} : vector<4x512xbf16> to vector<4x384xbf16>
    %6 = vector.extract_strided_slice %4 {offsets = [0, 1], sizes = [4, 384], strides = [1, 1]} : vector<4x512xbf16> to vector<4x384xbf16>
    %7 = vector.extract_strided_slice %4 {offsets = [0, 2], sizes = [4, 384], strides = [1, 1]} : vector<4x512xbf16> to vector<4x384xbf16>
    %8 = vector.extract_strided_slice %4 {offsets = [0, 18], sizes = [4, 384], strides = [1, 1]} : vector<4x512xbf16> to vector<4x384xbf16>
    %9 = vector.extract_strided_slice %4 {offsets = [0, 19], sizes = [4, 384], strides = [1, 1]} : vector<4x512xbf16> to vector<4x384xbf16>
    %10 = vector.extract_strided_slice %4 {offsets = [0, 20], sizes = [4, 384], strides = [1, 1]} : vector<4x512xbf16> to vector<4x384xbf16>
    %11 = vector.extract_strided_slice %4 {offsets = [0, 36], sizes = [4, 384], strides = [1, 1]} : vector<4x512xbf16> to vector<4x384xbf16>
    %12 = vector.extract_strided_slice %4 {offsets = [0, 37], sizes = [4, 384], strides = [1, 1]} : vector<4x512xbf16> to vector<4x384xbf16>
    %13 = vector.extract_strided_slice %4 {offsets = [0, 38], sizes = [4, 384], strides = [1, 1]} : vector<4x512xbf16> to vector<4x384xbf16>
    %14 = tpu.concatenate %5, %6, %7, %8, %9, %10, %11, %12, %13 in 0 : vector<4x384xbf16>, vector<4x384xbf16>, vector<4x384xbf16>, vector<4x384xbf16>, vector<4x384xbf16>, vector<4x384xbf16>, vector<4x384xbf16>, vector<4x384xbf16>, vector<4x384xbf16> -> vector<36x384xbf16>
    %c0_5 = arith.constant 0 : index
    %c0_6 = arith.constant 0 : index
    %15 = vector.load %arg5[%c0_5, %c0_6] : memref<8x36xbf16, #tpu.memory_space<vmem>>, vector<8x36xbf16>
    %cst = arith.constant dense<0.000000e+00> : vector<8x384xf32>
    %16 = tpu.matmul %15, %14, %cst {dimension_numbers = #tpu.dot_dimension_numbers<[1], [0], [0], [1], [0, 0, 1, 1], [], []>} : vector<8x36xbf16>, vector<36x384xbf16>, vector<8x384xf32> -> vector<8x384xf32>
    %c0_7 = arith.constant 0 : index
    %c0_8 = arith.constant 0 : index
    %17 = vector.load %arg6[%c0_7, %c0_8] : memref<8x1xf32, #tpu.memory_space<vmem>>, vector<8x1xf32>
    %18 = vector.broadcast %17 : vector<8x1xf32> to vector<8x384xf32>
    %19 = arith.addf %16, %18 : vector<8x384xf32>
    %cst_9 = arith.constant 2.000000e+01 : f32
    %20 = vector.broadcast %cst_9 : f32 to vector<8x384xf32>
    %21 = arith.minimumf %19, %20 : vector<8x384xf32>
    %22 = math.exp %21 : vector<8x384xf32>
    %cst_10 = arith.constant 2.000000e+00 : f32
    %23 = vector.broadcast %cst_10 : f32 to vector<8x384xf32>
    %24 = arith.addf %22, %23 : vector<8x384xf32>
    %25 = arith.mulf %22, %24 : vector<8x384xf32>
    %cst_11 = arith.constant 2.000000e+00 : f32
    %26 = vector.broadcast %cst_11 : f32 to vector<8x384xf32>
    %27 = arith.addf %25, %26 : vector<8x384xf32>
    %28 = tpu.reciprocal %27 {approx = true} : vector<8x384xf32> -> vector<8x384xf32>
    %29 = arith.mulf %25, %28 : vector<8x384xf32>
    %cst_12 = arith.constant 2.000000e+01 : f32
    %30 = vector.broadcast %cst_12 : f32 to vector<8x384xf32>
    %31 = arith.cmpf ogt, %19, %30 : vector<8x384xf32>
    %32 = arith.mulf %19, %29 : vector<8x384xf32>
    %33 = arith.select %31, %19, %32 : vector<8x384xi1>, vector<8x384xf32>
    %34 = arith.truncf %33 : vector<8x384xf32> to vector<8x384xbf16>
    %c0_13 = arith.constant 0 : index
    %c0_14 = arith.constant 0 : index
    %c0_15 = arith.constant 0 : index
    %35 = vector.load %arg7[%c0_13, %c0_14, %c0_15] : memref<1x8x384xbf16, #tpu.memory_space<vmem>>, vector<1x8x384xbf16>
    %36 = vector.shape_cast %35 : vector<1x8x384xbf16> to vector<8x384xbf16>
    %37 = vector.shape_cast %34 : vector<8x384xbf16> to vector<1x8x384xbf16>
    tpu.vector_store %arg7[%c0_13, %c0_14, %c0_15], %37 {strides = array<i32>} : memref<1x8x384xbf16, #tpu.memory_space<vmem>>, vector<1x8x384xbf16>,
    return
  }
  func.func @transform_0(%arg0: i32, %arg1: i32, %arg2: i32) -> (i32, i32, i32) {
    %c0_i32 = arith.constant 0 : i32
    %c0_i32_0 = arith.constant 0 : i32
    return %arg0, %c0_i32, %arg1 : i32, i32, i32
  }
  func.func @transform_1(%arg0: i32, %arg1: i32, %arg2: i32) -> (i32, i32, i32) {
    %c1_i32 = arith.constant 1 : i32
    %0 = arith.addi %arg1, %c1_i32 : i32
    %c3_i32 = arith.constant 3 : i32
    %1 = arith.muli %0, %c3_i32 : i32
    %c0_i32 = arith.constant 0 : i32
    %c0_i32_0 = arith.constant 0 : i32
    return %arg0, %c0_i32, %1 : i32, i32, i32
  }
  func.func @transform_2(%arg0: i32, %arg1: i32, %arg2: i32) -> (i32, i32) {
    %c0_i32 = arith.constant 0 : i32
    %c0_i32_0 = arith.constant 0 : i32
    return %arg2, %c0_i32 : i32, i32
  }
  func.func @transform_3(%arg0: i32, %arg1: i32, %arg2: i32) -> (i32, i32) {
    %c0_i32 = arith.constant 0 : i32
    %c0_i32_0 = arith.constant 0 : i32
    return %arg2, %c0_i32 : i32, i32
  }
  func.func @transform_4(%arg0: i32, %arg1: i32, %arg2: i32) -> (i32, i32, i32) {
    %c0_i32 = arith.constant 0 : i32
    return %arg0, %arg2, %arg1 : i32, i32, i32
  }
}

</mosaic_0001>

<llo_original>
// kernel: conv_layer_forward.1
$region0: #{conv_layer_forward.1}
  #allocation0 [shape = 'u32[]', space=smem, size = 0x4, offset = 0x4, fixed_abs, tag = 'smem constant byte address 0x4 - core index']
  #allocation1 [shape = 'u32[72,128]{1,0:T(1,128)}', space=vmem, size = 0x9000, scoped, tag = 'internal scratch']
  %s0 = inlined_call_operand.vmem [shape: bf16[2,4,522], index: 0, kind: input, shape index: {}, may-alias: {0,1}]
  %s1 = inlined_call_operand.vmem [shape: bf16[2,4,522], index: 1, kind: input, shape index: {}, may-alias: {0,1}]
  %s2 = inlined_call_operand.vmem [shape: bf16[8,36], index: 2, kind: input, shape index: {}]
  %s3 = inlined_call_operand.vmem [shape: f32[8,1], index: 3, kind: input, shape index: {}]
  %s4 = inlined_call_operand.vmem [shape: bf16[2,8,384], index: 4, kind: output, shape index: {}]
  %s5 = sld [smem:[#allocation0]]
  $region49: #{conv_layer_forward.1} parent=0
    _
  %s7 = ssub.s32 1, %s5
  %s8 = scalar_select 0, %s7, %s5
  loop: start=0, step=1, limit=4
  $region2: #{conv_layer_forward.1} parent=0 // loop_pre_header
    _
  $region3: #{conv_layer_forward.1} parent=0 // loop_header
    %s10 = sphi 0, %s14
    %p11 = scmp.ge.s32.totalorder %s10, 4
    %s17 = sphi 0, %s36
    %s18 = sphi 0, %s32
    %s19 = sphi 0, %s28
    %s20 = sphi 0, %s17
    %s21 = sphi 0, %s18
    %s22 = sphi 0, %s19
    %s23 = sphi 0, %s20
    %s24 = sphi 0, %s21
    %s25 = sphi 0, %s22
    %s41 = sphi 0, %s43
    %s44 = sphi 0, %s41
    %s45 = sphi 0, %s44
    %s61 = sphi 0, %s45
    %s73 = sphi 0, %s75
    %s76 = sphi 0, %s73
    %s77 = sphi 0, %s76
    %s93 = sphi 0, %s77
    %s99 = sphi 0, %s101
    %s102 = sphi 0, %s99
    %s103 = sphi 0, %s102
    %s119 = sphi 0, %s103
    %s125 = sphi 0, %s127
    %s128 = sphi 0, %s125
    %s129 = sphi 0, %s128
    %s145 = sphi 0, %s129
    %s155 = sphi 0, %s157
    %s158 = sphi 0, %s155
    %s159 = sphi 0, %s158
    %s175 = sphi 0, %s159
  $region4: #{conv_layer_forward.1} parent=0 // loop_header_branch
    %13 = sbr.rel (%p11) target = $region8
  $region5: #{conv_layer_forward.1} parent=0 // loop_body
    %s15 = ssub.s32 %s10, 1
    %s16 = ssub.s32 %s10, 2
    %s26 = sadd.s32 1, %s19
    %p27 = scmp.ge.s32.totalorder %s26, 1
    %s28 = scalar_select %p27, 0, %s26
    %s29 = sadd.s32 1, %s18
    %s30 = scalar_select %p27, %s29, %s18
    %p31 = scmp.ge.s32.totalorder %s30, 1
    %s32 = scalar_select %p31, 0, %s30
    %s33 = sadd.s32 1, %s17
    %s34 = scalar_select %p31, %s33, %s17
    %p35 = scmp.ge.s32.totalorder %s34, 2
    %s36 = scalar_select %p35, 0, %s34
    %s37 = ssub.s32 %s17, %s36
    %s38 = ssub.s32 %s18, %s32
    %s39 = sor.u32 %s37, %s38
    %p40 = scmp.eq.s32.totalorder %s39, 0
    %s42 = sadd.s32 %s41, 1
    %s43 = scalar_select %p40, %s41, %s42
    %p46 = pneg %p40
    %p47 = scmp.eq.s32.totalorder %s10, 1
    %p48 = por %p46, %p47
    %p49 = scmp.ne.s32.totalorder %s41, %s44
    %p50 = scmp.eq.s32.totalorder %s10, 0
    %p51 = por %p49, %p50
    %p52 = scmp.ne.s32.totalorder %s41, %s44
    %p53 = scmp.eq.s32.totalorder %s15, 1
    %p54 = por %p52, %p53
    %p55 = scmp.ne.s32.totalorder %s44, %s45
    %p56 = scmp.eq.s32.totalorder %s15, 0
    %p57 = por %p55, %p56
    %p58 = scmp.ne.s32.totalorder %s44, %s45
    %p59 = scmp.eq.s32.totalorder %s16, 1
    %p60 = por %p58, %p59
    %p62 = scmp.ne.s32.totalorder %s45, %s61
    %p63 = scmp.eq.s32.totalorder %s16, 0
    %p64 = por %p62, %p63
    %s65 = sadd.s32 %s18, 1
    %s66 = smul.u32 %s65, 3
    %s67 = sadd.s32 %s32, 1
    %s68 = smul.u32 %s67, 3
    %s69 = ssub.s32 %s17, %s36
    %s70 = ssub.s32 %s66, %s68
    %s71 = sor.u32 %s69, %s70
    %p72 = scmp.eq.s32.totalorder %s71, 0
    %s74 = sadd.s32 %s73, 1
    %s75 = scalar_select %p72, %s73, %s74
    %p78 = pneg %p72
    %p79 = scmp.eq.s32.totalorder %s10, 1
    %p80 = por %p78, %p79
    %p81 = scmp.ne.s32.totalorder %s73, %s76
    %p82 = scmp.eq.s32.totalorder %s10, 0
    %p83 = por %p81, %p82
    %p84 = scmp.ne.s32.totalorder %s73, %s76
    %p85 = scmp.eq.s32.totalorder %s15, 1
    %p86 = por %p84, %p85
    %p87 = scmp.ne.s32.totalorder %s76, %s77
    %p88 = scmp.eq.s32.totalorder %s15, 0
    %p89 = por %p87, %p88
    %p90 = scmp.ne.s32.totalorder %s76, %s77
    %p91 = scmp.eq.s32.totalorder %s16, 1
    %p92 = por %p90, %p91
    %p94 = scmp.ne.s32.totalorder %s77, %s93
    %p95 = scmp.eq.s32.totalorder %s16, 0
    %p96 = por %p94, %p95
    %s97 = ssub.s32 %s19, %s28
    %p98 = scmp.eq.s32.totalorder %s97, 0
    %s100 = sadd.s32 %s99, 1
    %s101 = scalar_select %p98, %s99, %s100
    %p104 = pneg %p98
    %p105 = scmp.eq.s32.totalorder %s10, 1
    %p106 = por %p104, %p105
    %p107 = scmp.ne.s32.totalorder %s99, %s102
    %p108 = scmp.eq.s32.totalorder %s10, 0
    %p109 = por %p107, %p108
    %p110 = scmp.ne.s32.totalorder %s99, %s102
    %p111 = scmp.eq.s32.totalorder %s15, 1
    %p112 = por %p110, %p111
    %p113 = scmp.ne.s32.totalorder %s102, %s103
    %p114 = scmp.eq.s32.totalorder %s15, 0
    %p115 = por %p113, %p114
    %p116 = scmp.ne.s32.totalorder %s102, %s103
    %p117 = scmp.eq.s32.totalorder %s16, 1
    %p118 = por %p116, %p117
    %p120 = scmp.ne.s32.totalorder %s103, %s119
    %p121 = scmp.eq.s32.totalorder %s16, 0
    %p122 = por %p120, %p121
    %s123 = ssub.s32 %s19, %s28
    %p124 = scmp.eq.s32.totalorder %s123, 0
    %s126 = sadd.s32 %s125, 1
    %s127 = scalar_select %p124, %s125, %s126
    %p130 = pneg %p124
    %p131 = scmp.eq.s32.totalorder %s10, 1
    %p132 = por %p130, %p131
    %p133 = scmp.ne.s32.totalorder %s125, %s128
    %p134 = scmp.eq.s32.totalorder %s10, 0
    %p135 = por %p133, %p134
    %p136 = scmp.ne.s32.totalorder %s125, %s128
    %p137 = scmp.eq.s32.totalorder %s15, 1
    %p138 = por %p136, %p137
    %p139 = scmp.ne.s32.totalorder %s128, %s129
    %p140 = scmp.eq.s32.totalorder %s15, 0
    %p141 = por %p139, %p140
    %p142 = scmp.ne.s32.totalorder %s128, %s129
    %p143 = scmp.eq.s32.totalorder %s16, 1
    %p144 = por %p142, %p143
    %p146 = scmp.ne.s32.totalorder %s129, %s145
    %p147 = scmp.eq.s32.totalorder %s16, 0
    %p148 = por %p146, %p147
    %s149 = ssub.s32 %s17, %s36
    %s150 = ssub.s32 %s19, %s28
    %s151 = sor.u32 %s149, %s150
    %s152 = ssub.s32 %s18, %s32
    %s153 = sor.u32 %s151, %s152
    %p154 = scmp.eq.s32.totalorder %s153, 0
    %s156 = sadd.s32 %s155, 1
    %s157 = scalar_select %p154, %s155, %s156
    %p160 = pneg %p154
    %p161 = scmp.eq.s32.totalorder %s10, 1
    %p162 = por %p160, %p161
    %p163 = scmp.ne.s32.totalorder %s155, %s158
    %p164 = scmp.eq.s32.totalorder %s10, 0
    %p165 = por %p163, %p164
    %p166 = scmp.ne.s32.totalorder %s155, %s158
    %p167 = scmp.eq.s32.totalorder %s15, 1
    %p168 = por %p166, %p167
    %p169 = scmp.ne.s32.totalorder %s158, %s159
    %p170 = scmp.eq.s32.totalorder %s15, 0
    %p171 = por %p169, %p170
    %p172 = scmp.ne.s32.totalorder %s158, %s159
    %p173 = scmp.eq.s32.totalorder %s16, 1
    %p174 = por %p172, %p173
    %p176 = scmp.ne.s32.totalorder %s159, %s175
    %p177 = scmp.eq.s32.totalorder %s16, 0
    %p178 = por %p176, %p177
    %p179 = scmp.le.s32.totalorder 1, %s10
    %p180 = scmp.lt.s32.totalorder %s10, 3
    %p181 = pnand %p179, %p180
    %p182 = pneg %p181
    // Predicated region
    $region9: #{conv_layer_forward.1} parent=5 // pred_check
      _
    $region10: #{conv_layer_forward.1} parent=5 // pred_check_branch
      %184 = sbr.rel (%p181) target = $region12
    $region11: #{conv_layer_forward.1} parent=5 // pred_region
      %s185 = ssub.s32 %s10, 1
      // Predicated region
      $region13: #{conv_layer_forward.1} parent=11 // pred_check
        %p186 = pneg %p115
      $region14: #{conv_layer_forward.1} parent=11 // pred_check_branch
        %188 = sbr.rel (%p186) target = $region16
      $region15: #{conv_layer_forward.1} parent=11 // pred_region
        %p189 = scmp.lt.s32.totalorder %s22, 0
        %s190 = scalar_select %p189, %s22, 0
        %s191 = smul.addr %s190, 4
        %s192 = scalar_lea.vmem %s2, %s191
      $region16: #{conv_layer_forward.1} parent=11 // pred_fallthru
        _
      // Predicated region
      $region17: #{conv_layer_forward.1} parent=11 // pred_check
        %p193 = pneg %p141
      $region18: #{conv_layer_forward.1} parent=11 // pred_check_branch
        %195 = sbr.rel (%p193) target = $region20
      $region19: #{conv_layer_forward.1} parent=11 // pred_region
        %p196 = scmp.lt.s32.totalorder %s22, 0
        %s197 = scalar_select %p196, %s22, 0
        %s198 = smul.addr %s197, 8
        %s199 = scalar_lea.vmem %s3, %s198
      $region20: #{conv_layer_forward.1} parent=11 // pred_fallthru
        _
    $region12: #{conv_layer_forward.1} parent=5 // pred_fallthru
      _
    %p200 = scmp.lt.s32.totalorder %s10, 2
    // Predicated region
    $region21: #{conv_layer_forward.1} parent=5 // pred_check
      %p201 = pneg %p200
    $region22: #{conv_layer_forward.1} parent=5 // pred_check_branch
      %203 = sbr.rel (%p201) target = $region24
    $region23: #{conv_layer_forward.1} parent=5 // pred_region
      // Predicated region
      $region25: #{conv_layer_forward.1} parent=23 // pred_check
        %p204 = pneg %p51
      $region26: #{conv_layer_forward.1} parent=23 // pred_check_branch
        %206 = sbr.rel (%p204) target = $region28
      $region27: #{conv_layer_forward.1} parent=23 // pred_region
        %s207 = smul.u32 3, %s18
        %s208 = ssub.s32 5, %s207
        %p209 = scmp.lt.s32.totalorder %s208, 3
        %s210 = scalar_select %p209, %s208, 3
        %s211 = smul.u32 2, %s210
        %p212 = scmp.lt.s32.totalorder %s17, 1
        %s213 = scalar_select %p212, %s17, 1
        %p214 = scmp.lt.s32.totalorder %s207, 4
        %s215 = scalar_select %p214, %s207, 4
        %s216 = smul.addr %s213, 5
        %s217 = sadd.s32 %s215, %s216
        %s218 = smul.addr %s217, 2
        %s219 = scalar_lea.vmem %s0, %s218
        %s220 = smul.u32 3, %s18
        %s221 = ssub.s32 5, %s220
        %p222 = scmp.lt.s32.totalorder %s221, 3
        %s223 = scalar_select %p222, %s221, 3
        %s224 = smul.u32 2, %s223
      $region28: #{conv_layer_forward.1} parent=23 // pred_fallthru
        _
      // Predicated region
      $region29: #{conv_layer_forward.1} parent=23 // pred_check
        %p225 = pneg %p83
      $region30: #{conv_layer_forward.1} parent=23 // pred_check_branch
        %227 = sbr.rel (%p225) target = $region32
      $region31: #{conv_layer_forward.1} parent=23 // pred_region
        %s228 = sadd.s32 %s18, 1
        %s229 = smul.u32 %s228, 3
        %p230 = scmp.lt.s32.totalorder %s17, 1
        %s231 = scalar_select %p230, %s17, 1
        %p232 = scmp.lt.s32.totalorder %s229, 4
        %s233 = scalar_select %p232, %s229, 4
        %s234 = smul.addr %s231, 5
        %s235 = sadd.s32 %s233, %s234
        %s236 = smul.addr %s235, 2
        %s237 = scalar_lea.vmem %s1, %s236
        %s238 = sadd.s32 %s18, 1
        %s239 = smul.u32 %s238, 3
      $region32: #{conv_layer_forward.1} parent=23 // pred_fallthru
        _
    $region24: #{conv_layer_forward.1} parent=5 // pred_fallthru
      _
    %p240 = scmp.le.s32.totalorder 1, %s10
    %p241 = scmp.lt.s32.totalorder %s10, 3
    %p242 = pnand %p240, %p241
    %p243 = pneg %p242
    // Predicated region
    $region33: #{conv_layer_forward.1} parent=5 // pred_check
      _
    $region34: #{conv_layer_forward.1} parent=5 // pred_check_branch
      %245 = sbr.rel (%p242) target = $region36
    $region35: #{conv_layer_forward.1} parent=5 // pred_region
      %s246 = ssub.s32 %s10, 1
      %s247 = smul.u32 3, %s21
      %s248 = ssub.s32 5, %s247
      %p249 = scmp.lt.s32.totalorder %s248, 3
      %s250 = scalar_select %p249, %s248, 3
      %s251 = smul.u32 2, %s250
      %p252 = scmp.lt.s32.totalorder %s20, 1
      %s253 = scalar_select %p252, %s20, 1
      %p254 = scmp.lt.s32.totalorder %s247, 4
      %s255 = scalar_select %p254, %s247, 4
      %s256 = smul.addr %s253, 5
      %s257 = sadd.s32 %s255, %s256
      %s258 = smul.addr %s257, 2
      %s259 = scalar_lea.vmem %s0, %s258
      %p260 = pneg %p57
      %p261 = pneg %p54
      %s262 = sadd.s32 %s21, 1
      %s263 = smul.u32 %s262, 3
      %p264 = scmp.lt.s32.totalorder %s20, 1
      %s265 = scalar_select %p264, %s20, 1
      %p266 = scmp.lt.s32.totalorder %s263, 4
      %s267 = scalar_select %p266, %s263, 4
      %s268 = smul.addr %s265, 5
      %s269 = sadd.s32 %s267, %s268
      %s270 = smul.addr %s269, 2
      %s271 = scalar_lea.vmem %s1, %s270
      %p272 = pneg %p89
      %p273 = pneg %p86
      %p274 = scmp.lt.s32.totalorder %s22, 0
      %s275 = scalar_select %p274, %s22, 0
      %s276 = smul.addr %s275, 4
      %s277 = scalar_lea.vmem %s2, %s276
      %p278 = pneg %p115
      %p279 = pneg %p112
      %p280 = scmp.lt.s32.totalorder %s22, 0
      %s281 = scalar_select %p280, %s22, 0
      %s282 = smul.addr %s281, 8
      %s283 = scalar_lea.vmem %s3, %s282
      %p284 = pneg %p141
      %p285 = pneg %p138
      %p286 = pneg %p171
      %p287 = pneg %p168
      %s288 = smul.u32 3, %s21
      %p289 = scmp.lt.s32.totalorder %s20, 1
      %s290 = scalar_select %p289, %s20, 1
      %p291 = scmp.lt.s32.totalorder %s22, 0
      %s292 = scalar_select %p291, %s22, 0
      %p293 = scmp.lt.s32.totalorder %s288, 2
      %s294 = scalar_select %p293, %s288, 2
      %s295 = smul.addr %s292, 3
      %s296 = sadd.s32 %s294, %s295
      %s297 = smul.addr %s290, 3
      %s298 = sadd.s32 %s296, %s297
      %s299 = smul.addr %s298, 4
      %s300 = scalar_lea.vmem %s4, %s299
      %s301 = smul.u32 3, %s21
      %s302 = ssub.s32 5, %s301
      %p303 = scmp.lt.s32.totalorder %s302, 3
      %s304 = scalar_select %p303, %s302, 3
      %s305 = smul.u32 2, %s304
      %p306 = scmp.lt.s32.totalorder %s20, 1
      %s307 = scalar_select %p306, %s20, 1
      %p308 = scmp.lt.s32.totalorder %s301, 4
      %s309 = scalar_select %p308, %s301, 4
      %s310 = smul.addr %s307, 5
      %s311 = sadd.s32 %s309, %s310
      %s312 = smul.addr %s311, 2
      %s313 = scalar_lea.vmem %s0, %s312
      %s314 = smul.u32 3, %s21
      %s315 = ssub.s32 5, %s314
      %p316 = scmp.lt.s32.totalorder %s315, 3
      %s317 = scalar_select %p316, %s315, 3
      %s318 = smul.u32 2, %s317
      %s319 = sadd.s32 %s21, 1
      %s320 = smul.u32 %s319, 3
      %p321 = scmp.lt.s32.totalorder %s20, 1
      %s322 = scalar_select %p321, %s20, 1
      %p323 = scmp.lt.s32.totalorder %s320, 4
      %s324 = scalar_select %p323, %s320, 4
      %s325 = smul.addr %s322, 5
      %s326 = sadd.s32 %s324, %s325
      %s327 = smul.addr %s326, 2
      %s328 = scalar_lea.vmem %s1, %s327
      %s329 = sadd.s32 %s21, 1
      %s330 = smul.u32 %s329, 3
      %p331 = scmp.lt.s32.totalorder %s22, 0
      %s332 = scalar_select %p331, %s22, 0
      %s333 = smul.addr %s332, 4
      %s334 = scalar_lea.vmem %s2, %s333
      %p335 = scmp.lt.s32.totalorder %s22, 0
      %s336 = scalar_select %p335, %s22, 0
      %s337 = smul.addr %s336, 8
      %s338 = scalar_lea.vmem %s3, %s337
      %s339 = smul.u32 3, %s21
      %p340 = scmp.lt.s32.totalorder %s20, 1
      %s341 = scalar_select %p340, %s20, 1
      %p342 = scmp.lt.s32.totalorder %s22, 0
      %s343 = scalar_select %p342, %s22, 0
      %p344 = scmp.lt.s32.totalorder %s339, 2
      %s345 = scalar_select %p344, %s339, 2
      %s346 = smul.addr %s343, 3
      %s347 = sadd.s32 %s345, %s346
      %s348 = smul.addr %s341, 3
      %s349 = sadd.s32 %s347, %s348
      %s350 = smul.addr %s349, 4
      %s351 = scalar_lea.vmem %s4, %s350
      %s352 = smul.u32 3, %s21
      %v354 = vld [vmem:[%s313] sm:$0x3f]
      %v355 = vld [vmem:[%s328] sm:$0x3]
      %357 = vst [vmem:[#allocation1] ss:$4 sm:$0xff] %v354
      %v358 = vld.sshfl [vmem:[#allocation1] sm:$0xff pattern:$0x73625140]
      %v360 = vld.sshfl [vmem:[#allocation1 + $0x8] sm:$0xff pattern:$0x73625140]
      %v362 = vld.sshfl [vmem:[#allocation1 + $0x10] sm:$0xff pattern:$0x73625140]
      %v365 = vrot.slane %v358, 6
      %v366 = vrot.slane %v360, 6
      %v367 = vrot.slane %v362, 6
      %v368 = vrot.slane %v355, 6
      %369 = vrot.lane.b32.xlu0 %v365, 127
      %v370 = vpop.permute.xlu0 %369
      %371 = vrot.lane.b32.xlu0 %v366, 127
      %v372 = vpop.permute.xlu0 %371
      %373 = vrot.lane.b32.xlu0 %v367, 127
      %v374 = vpop.permute.xlu0 %373
      %375 = vrot.lane.b32.xlu0 %v368, 127
      %v376 = vpop.permute.xlu0 %375
      %vm377 = vcmask 1039360
      %v378 = vsel %vm377, %v370, %v372
      %v379 = vsel %vm377, %v372, %v374
      %v380 = vsel %vm377, %v374, %v376
      %v381 = vrot.slane %v358, 4
      %v382 = vrot.slane %v360, 4
      %v383 = vrot.slane %v362, 4
      %v384 = vrot.slane %v355, 4
      %385 = vrot.lane.b32.xlu0 %v381, 126
      %v386 = vpop.permute.xlu0 %385
      %387 = vrot.lane.b32.xlu0 %v382, 126
      %v388 = vpop.permute.xlu0 %387
      %389 = vrot.lane.b32.xlu0 %v383, 126
      %v390 = vpop.permute.xlu0 %389
      %391 = vrot.lane.b32.xlu0 %v384, 126
      %v392 = vpop.permute.xlu0 %391
      %vm393 = vcmask 1031168
      %v394 = vsel %vm393, %v386, %v388
      %v395 = vsel %vm393, %v388, %v390
      %v396 = vsel %vm393, %v390, %v392
      %v397 = vrot.slane %v358, 2
      %v398 = vrot.slane %v360, 2
      %v399 = vrot.slane %v362, 2
      %v400 = vrot.slane %v355, 2
      %401 = vrot.lane.b32.xlu0 %v397, 110
      %v402 = vpop.permute.xlu0 %401
      %403 = vrot.lane.b32.xlu0 %v398, 110
      %v404 = vpop.permute.xlu0 %403
      %405 = vrot.lane.b32.xlu0 %v399, 110
      %v406 = vpop.permute.xlu0 %405
      %407 = vrot.lane.b32.xlu0 %v400, 110
      %v408 = vpop.permute.xlu0 %407
      %vm409 = vcmask 900096
      %v410 = vsel %vm409, %v402, %v404
      %v411 = vsel %vm409, %v404, %v406
      %v412 = vsel %vm409, %v406, %v408
      %413 = vrot.lane.b32.xlu0 %v358, 109
      %v414 = vpop.permute.xlu0 %413
      %415 = vrot.lane.b32.xlu0 %v360, 109
      %v416 = vpop.permute.xlu0 %415
      %417 = vrot.lane.b32.xlu0 %v362, 109
      %v418 = vpop.permute.xlu0 %417
      %419 = vrot.lane.b32.xlu0 %v355, 109
      %v420 = vpop.permute.xlu0 %419
      %vm421 = vcmask 891904
      %v422 = vsel %vm421, %v414, %v416
      %v423 = vsel %vm421, %v416, %v418
      %v424 = vsel %vm421, %v418, %v420
      %425 = vrot.lane.b32.xlu0 %v365, 108
      %v426 = vpop.permute.xlu0 %425
      %427 = vrot.lane.b32.xlu0 %v366, 108
      %v428 = vpop.permute.xlu0 %427
      %429 = vrot.lane.b32.xlu0 %v367, 108
      %v430 = vpop.permute.xlu0 %429
      %431 = vrot.lane.b32.xlu0 %v368, 108
      %v432 = vpop.permute.xlu0 %431
      %vm433 = vcmask 883712
      %v434 = vsel %vm433, %v426, %v428
      %v435 = vsel %vm433, %v428, %v430
      %v436 = vsel %vm433, %v430, %v432
      %437 = vrot.lane.b32.xlu0 %v381, 92
      %v438 = vpop.permute.xlu0 %437
      %439 = vrot.lane.b32.xlu0 %v382, 92
      %v440 = vpop.permute.xlu0 %439
      %441 = vrot.lane.b32.xlu0 %v383, 92
      %v442 = vpop.permute.xlu0 %441
      %443 = vrot.lane.b32.xlu0 %v384, 92
      %v444 = vpop.permute.xlu0 %443
      %vm445 = vcmask 752640
      %v446 = vsel %vm445, %v438, %v440
      %v447 = vsel %vm445, %v440, %v442
      %v448 = vsel %vm445, %v442, %v444
      %449 = vrot.lane.b32.xlu0 %v397, 91
      %v450 = vpop.permute.xlu0 %449
      %451 = vrot.lane.b32.xlu0 %v398, 91
      %v452 = vpop.permute.xlu0 %451
      %453 = vrot.lane.b32.xlu0 %v399, 91
      %v454 = vpop.permute.xlu0 %453
      %455 = vrot.lane.b32.xlu0 %v400, 91
      %v456 = vpop.permute.xlu0 %455
      %vm457 = vcmask 744448
      %v458 = vsel %vm457, %v450, %v452
      %v459 = vsel %vm457, %v452, %v454
      %v460 = vsel %vm457, %v454, %v456
      %461 = vrot.lane.b32.xlu0 %v358, 90
      %v462 = vpop.permute.xlu0 %461
      %463 = vrot.lane.b32.xlu0 %v360, 90
      %v464 = vpop.permute.xlu0 %463
      %465 = vrot.lane.b32.xlu0 %v362, 90
      %v466 = vpop.permute.xlu0 %465
      %467 = vrot.lane.b32.xlu0 %v355, 90
      %v468 = vpop.permute.xlu0 %467
      %vm469 = vcmask 736256
      %v470 = vsel %vm469, %v462, %v464
      %v471 = vsel %vm469, %v464, %v466
      %v472 = vsel %vm469, %v466, %v468
      %vm473 = vcmask 1041408
      %v475 = vsel %vm473, %v358, %v378
      %v477 = vsel %vm473, %v360, %v379
      %v479 = vsel %vm473, %v362, %v380
      %vm480 = vcmask 1043456
      %v482 = vsel %vm480, %v475, %v394
      %v484 = vsel %vm480, %v477, %v395
      %v486 = vsel %vm480, %v479, %v396
      %vm487 = vcmask 1045504
      %v489 = vsel %vm487, %v482, %v410
      %v492 = vsel %vm487, %v484, %v411
      %v495 = vsel %vm487, %v486, %v412
      %v499 = vsel %vm473, %v422, %v434
      %v502 = vsel %vm473, %v423, %v435
      %v505 = vsel %vm473, %v424, %v436
      %v507 = vsel %vm480, %v499, %v446
      %v509 = vsel %vm480, %v502, %v447
      %v511 = vsel %vm480, %v505, %v448
      %v513 = vsel %vm487, %v507, %v458
      %v516 = vsel %vm487, %v509, %v459
      %v519 = vsel %vm487, %v511, %v460
      %v521 = vld [vmem:[%s334] sm:$0xf]
      %v522 = vld [vmem:[%s338] sm:$0xff]
      %524 = vset.pattern.permute.xlu0 0
      %525 = vperm.xlu0 %524, %v522
      %v526 = vpop.permute.xlu0 %525
      %vm528 = vcmask 293888
      %v530 = vsel %vm528, %v521, 0
      %v533 = vsel %vm473, %v470, 0
      %v536 = vsel %vm473, %v471, 0
      %v539 = vsel %vm473, %v472, 0
      %541 = vmatpush.bf16.msra.mxu0 0
      %542 = vmatpush.bf16.msra.mxu0 0
      %543 = vmatpush.bf16.msra.mxu0 0
      %544 = vmatpush.bf16.msra.mxu0 0
      %545 = vmatpush.bf16.msra.mxu0 0
      %546 = vmatpush.bf16.msra.mxu0 %v533
      %547 = vmatpush.bf16.msra.mxu0 %v513
      %548 = vmatpush.bf16.msra.mxu0 %v489
      %549 = vmatmul.bf16.gmra.mxu0 %v530
      %v550 = vpop.f32.mrf.mxu0
      %v551 = vadd.f32 %v526, %v550
      %v552 = vpop.f32.mrf.mxu0
      %553 = vdwg.mxu0
      %554 = vmatpush.bf16.msra.mxu0 0
      %555 = vmatpush.bf16.msra.mxu0 0
      %556 = vmatpush.bf16.msra.mxu0 0
      %557 = vmatpush.bf16.msra.mxu0 0
      %558 = vmatpush.bf16.msra.mxu0 0
      %559 = vmatpush.bf16.msra.mxu0 %v536
      %560 = vmatpush.bf16.msra.mxu0 %v516
      %561 = vmatpush.bf16.msra.mxu0 %v492
      %562 = vmatmul.bf16.gmra.mxu0 %v530
      %v563 = vpop.f32.mrf.mxu0
      %v564 = vadd.f32 %v526, %v563
      %v565 = vpop.f32.mrf.mxu0
      %566 = vdwg.mxu0
      %567 = vmatpush.bf16.msra.mxu0 0
      %568 = vmatpush.bf16.msra.mxu0 0
      %569 = vmatpush.bf16.msra.mxu0 0
      %570 = vmatpush.bf16.msra.mxu0 0
      %571 = vmatpush.bf16.msra.mxu0 0
      %572 = vmatpush.bf16.msra.mxu0 %v539
      %573 = vmatpush.bf16.msra.mxu0 %v519
      %574 = vmatpush.bf16.msra.mxu0 %v495
      %575 = vmatmul.bf16.gmra.mxu0 %v530
      %v576 = vpop.f32.mrf.mxu0
      %v577 = vadd.f32 %v526, %v576
      %v578 = vpop.f32.mrf.mxu0
      %579 = vdwg.mxu0
      %v580 = vmin.f32 %v551, 20.0
      %v581 = vmin.f32 %v564, 20.0
      %v582 = vmin.f32 %v577, 20.0
      %v583 = vmul.f32 %v580, 1.442695
      %v584 = vpow.pop %v583
      %v585 = vmul.f32 %v581, 1.442695
      %v586 = vpow.pop %v585
      %v587 = vmul.f32 %v582, 1.442695
      %v588 = vpow.pop %v587
      %v589 = vadd.f32 %v584, 2.0
      %v590 = vadd.f32 %v586, 2.0
      %v591 = vadd.f32 %v588, 2.0
      %v592 = vmul.f32 %v584, %v589
      %v593 = vmul.f32 %v586, %v590
      %v594 = vmul.f32 %v588, %v591
      %v595 = vadd.f32 %v592, 2.0
      %v596 = vadd.f32 %v593, 2.0
      %v597 = vadd.f32 %v594, 2.0
      %v598 = vrcp.pop %v595
      %v599 = vrcp.pop %v596
      %v600 = vrcp.pop %v597
      %v601 = vmul.f32 %v592, %v598
      %v602 = vmul.f32 %v593, %v599
      %v603 = vmul.f32 %v594, %v600
      %vm604 = vcmp.gt.f32.partialorder %v551, 20.0
      %vm605 = vcmp.gt.f32.partialorder %v564, 20.0
      %vm606 = vcmp.gt.f32.partialorder %v577, 20.0
      %v607 = vmul.f32 %v551, %v601
      %v608 = vmul.f32 %v564, %v602
      %v609 = vmul.f32 %v577, %v603
      %v610 = vsel %vm604, %v551, %v607
      %v611 = vsel %vm605, %v564, %v608
      %v612 = vsel %vm606, %v577, %v609
      %v613 = vpack.c.bf16 %v611, %v610
      %v614 = vpack.c.bf16 %v612, %v612
      %615 = vst [vmem:[%s351] sm:$0xff] %v613
      %616 = vst [vmem:[%s351 + $0x8] sm:$0xf] %v614
      %s617 = smul.u32 3, %s21
      %p618 = scmp.lt.s32.totalorder %s20, 1
      %s619 = scalar_select %p618, %s20, 1
      %p620 = scmp.lt.s32.totalorder %s22, 0
      %s621 = scalar_select %p620, %s22, 0
      %p622 = scmp.lt.s32.totalorder %s617, 2
      %s623 = scalar_select %p622, %s617, 2
      %s624 = smul.addr %s621, 3
      %s625 = sadd.s32 %s623, %s624
      %s626 = smul.addr %s619, 3
      %s627 = sadd.s32 %s625, %s626
      %s628 = smul.addr %s627, 4
      %s629 = scalar_lea.vmem %s4, %s628
      // Predicated region
      $region37: #{conv_layer_forward.1} parent=35 // pred_check
        %p630 = pneg %p168
      $region38: #{conv_layer_forward.1} parent=35 // pred_check_branch
        %632 = sbr.rel (%p630) target = $region40
      $region39: #{conv_layer_forward.1} parent=35 // pred_region
        %s633 = smul.u32 3, %s21
      $region40: #{conv_layer_forward.1} parent=35 // pred_fallthru
        _
    $region36: #{conv_layer_forward.1} parent=5 // pred_fallthru
      _
    %p634 = scmp.le.s32.totalorder 2, %s10
    // Predicated region
    $region41: #{conv_layer_forward.1} parent=5 // pred_check
      %p635 = pneg %p634
    $region42: #{conv_layer_forward.1} parent=5 // pred_check_branch
      %637 = sbr.rel (%p635) target = $region44
    $region43: #{conv_layer_forward.1} parent=5 // pred_region
      %s638 = ssub.s32 %s10, 2
      // Predicated region
      $region45: #{conv_layer_forward.1} parent=43 // pred_check
        %p639 = pneg %p174
      $region46: #{conv_layer_forward.1} parent=43 // pred_check_branch
        %641 = sbr.rel (%p639) target = $region48
      $region47: #{conv_layer_forward.1} parent=43 // pred_region
        %s642 = smul.u32 3, %s24
        %p643 = scmp.lt.s32.totalorder %s23, 1
        %s644 = scalar_select %p643, %s23, 1
        %p645 = scmp.lt.s32.totalorder %s25, 0
        %s646 = scalar_select %p645, %s25, 0
        %p647 = scmp.lt.s32.totalorder %s642, 2
        %s648 = scalar_select %p647, %s642, 2
        %s649 = smul.addr %s646, 3
        %s650 = sadd.s32 %s648, %s649
        %s651 = smul.addr %s644, 3
        %s652 = sadd.s32 %s650, %s651
        %s653 = smul.addr %s652, 4
        %s654 = scalar_lea.vmem %s4, %s653
      $region48: #{conv_layer_forward.1} parent=43 // pred_fallthru
        _
    $region44: #{conv_layer_forward.1} parent=5 // pred_fallthru
      _
  $region6: #{conv_layer_forward.1} parent=0 // loop_footer
    %s14 = sadd.s32 1, %s10
  $region7: #{conv_layer_forward.1} parent=0 // loop_footer_branch
    %9 = sbr.rel target = $region3
  $region8: #{conv_layer_forward.1} parent=0 // loop_exit
    _

</llo_original>
